<compile_context>
chip_gen: v7x
topology: tpu7x:2x2x1
jax: 0.10.0
libtpu: 0.0.40
codegen_flags: <defaults>
</compile_context>

<pallas_src>
import numpy as np
import jax
import jax.numpy as jnp
from jax.experimental import pallas as pl
from jax.experimental.pallas import tpu as pltpu


LANES = 128


def _make_pair_gather_kernel(k_pairs):
    """One grid step gathers `k_pairs` pairs (3 rows each) straight from HBM
    into the output VMEM tile via manual DMAs (no VMEM->VMEM copy)."""

    def kernel(i1_ref, i2_ref, iu_ref,   # scalar-prefetched index tables (SMEM)
               feats_ref,                # full [R, L, 128] feature table in HBM (pl.ANY)
               out_ref,                  # [K, 3, L, 128] output tile (VMEM)
               sem_ref):                 # [K, 3] DMA semaphores
        base = pl.program_id(0) * k_pairs
        copies = []
        for j in range(k_pairs):                       # static, unrolled
            p = base + j
            for s, idx_ref in enumerate((i1_ref, i2_ref, iu_ref)):
                cp = pltpu.make_async_copy(
                    feats_ref.at[idx_ref[p]],           # (L, 128) HBM row
                    out_ref.at[j, s],                   # (L, 128) slot in out tile
                    sem_ref.at[j, s])
                cp.start()
                copies.append(cp)
        for cp in copies:                               # overlap all 3K gathers
            cp.wait()

    return kernel


def build_pair_indices(obj_num):
    """Host-side replica of the PyTorch begin_idx / pair-enumeration bookkeeping.

    Returns three flat int32 arrays (idx_o1, idx_o2, idx_union), each of length
    P = sum_i n_i*(n_i-1)/2, holding row indices into roi_pooled_feats.
    """
    i1, i2, iu = [], [], []
    begin = 0
    for n in np.asarray(obj_num).tolist():
        n = int(n)
        block = n + n * (n - 1) // 2                    # == 0.5*n^2 + 0.5*n
        if n > 1:
            obj_start = begin
            union_start = begin + n
            cur_union = 0
            for o1 in range(n):
                for o2 in range(o1 + 1, n):
                    i1.append(obj_start + o1)
                    i2.append(obj_start + o2)
                    iu.append(union_start + cur_union)
                    cur_union += 1
        begin += block
    return (np.asarray(i1, dtype=np.int32),
            np.asarray(i2, dtype=np.int32),
            np.asarray(iu, dtype=np.int32))


def obj_pair_layer(roi_pooled_feats, batch_size, obj_num, *, max_pairs_per_step=16):
    """JAX/Pallas equivalent of _ObjPairLayer.forward.

    roi_pooled_feats: [R, C, H, W]
    obj_num:          host int array [batch_size]; values must be static —
                      the output shape depends on them, as in the PyTorch code.
    returns:          [P, 3, C, H, W] with P = sum_i n_i*(n_i-1)/2
    """
    del batch_size  # unused in the reference forward as well
    idx_o1, idx_o2, idx_u = build_pair_indices(obj_num)
    R, C, H, W = roi_pooled_feats.shape
    P = int(idx_o1.shape[0])
    if P == 0:
        # All images have <= 1 object -> empty result, like torch.Tensor([]).
        return jnp.zeros((0, 3, C, H, W), roi_pooled_feats.dtype)

    # Union indices are the largest per image by construction, so this checks
    # the whole index table against R.
    assert int(idx_u.max()) < R, "obj_num inconsistent with roi_pooled_feats rows"

    # Lane-dense layout: flatten each ROI to D features, pad D up to a multiple
    # of 128 lanes, present as [R, L, 128].  (No pad triggered when D % 128 == 0.)
    D = C * H * W
    Dp = -(-D // LANES) * LANES
    L = Dp // LANES
    itemsize = int(jnp.dtype(roi_pooled_feats.dtype).itemsize)

    feats = roi_pooled_feats.reshape(R, D)
    if Dp != D:
        feats = jnp.pad(feats, ((0, 0), (0, Dp - D)))
    feats = feats.reshape(R, L, LANES)

    # Chunk K pairs per grid step; keep the (double-buffered) output tile well
    # under the smallest default scoped-VMEM limit (16 MiB on v5e).
    pair_tile_bytes = 3 * Dp * itemsize
    vmem_budget = 4 * 1024 * 1024                       # per output buffer
    K = max(1, min(max_pairs_per_step, P, vmem_budget // max(pair_tile_bytes, 1)))
    n_steps = -(-P // K)
    Pp = n_steps * K

    def _pad_idx(a):
        if Pp == P:
            return a
        return np.concatenate([a, np.full((Pp - P,), a[-1], dtype=np.int32)])

    i1 = jnp.asarray(_pad_idx(idx_o1))
    i2 = jnp.asarray(_pad_idx(idx_o2))
    iu = jnp.asarray(_pad_idx(idx_u))

    # TODO(synk): object rows (o1/o2) are still re-read from HBM per pair; a
    # per-image VMEM-resident object block would cut read traffic further.
    gathered = pl.pallas_call(
        _make_pair_gather_kernel(K),
        out_shape=jax.ShapeDtypeStruct((Pp, 3, L, LANES), roi_pooled_feats.dtype),
        grid_spec=pltpu.PrefetchScalarGridSpec(
            num_scalar_prefetch=3,
            grid=(n_steps,),
            in_specs=[pl.BlockSpec(memory_space=pl.ANY)],          # feats stay in HBM
            out_specs=pl.BlockSpec((K, 3, L, LANES),
                                   lambda i, i1, i2, iu: (i, 0, 0, 0)),
            scratch_shapes=[pltpu.SemaphoreType.DMA((K, 3))],
        ),
        compiler_params=pltpu.CompilerParams(
            dimension_semantics=("parallel",),
            vmem_limit_bytes=32 * 1024 * 1024),
        cost_estimate=pl.CostEstimate(
            flops=0, transcendentals=0,
            bytes_accessed=6 * Pp * Dp * itemsize),
    )(i1, i2, iu, feats)

    out = gathered
    if Pp != P:
        out = out[:P]
    out = out.reshape(P, 3, Dp)
    if Dp != D:
        out = out[:, :, :D]
    return out.reshape(P, 3, C, H, W)


def _reference_numpy(feats, obj_num):
    """Direct NumPy transcription of the PyTorch forward, for verification."""
    out = []
    begin = 0
    for n in np.asarray(obj_num).tolist():
        n = int(n)
        block = n + n * (n - 1) // 2
        if n > 1:
            cur = feats[begin:begin + block]
            obj_feats, union_feats = cur[:n], cur[n:]
            cur_union = 0
            for o1 in range(n):
                for o2 in range(o1 + 1, n):
                    out.append(np.stack([obj_feats[o1],
                                         obj_feats[o2],
                                         union_feats[cur_union]], axis=0))
                    cur_union += 1
        begin += block
    if not out:
        return np.zeros((0, 3) + feats.shape[1:], feats.dtype)
    return np.stack(out, axis=0)


if __name__ == "__main__":
    key = jax.random.PRNGKey(0)
    C, H, W = 4, 8, 8
    obj_num = np.array([3, 2], dtype=np.int32)        # batch of 2 images
    # per image rows = n + n(n-1)/2  -> 6 + 3 = 9 total ROIs
    R = int(sum(int(n) + int(n) * (int(n) - 1) // 2 for n in obj_num))
    roi_pooled_feats = jax.random.normal(key, (R, C, H, W), dtype=jnp.float32)

    out = obj_pair_layer(roi_pooled_feats, batch_size=obj_num.shape[0],
                         obj_num=obj_num)
    out = jax.block_until_ready(out)

    ref = _reference_numpy(np.asarray(roi_pooled_feats), obj_num)
    assert out.shape == ref.shape, (out.shape, ref.shape)
    assert np.allclose(np.asarray(out), ref), "mismatch vs reference"
    print("KERNEL_OK")
</pallas_src>

<mosaic_0001>
module attributes {stable_mosaic.version = 11 : i64} {
  func.func @kernel(%arg0: i32, %arg1: memref<4xi32, #tpu.memory_space<smem>>, %arg2: memref<4xi32, #tpu.memory_space<smem>>, %arg3: memref<4xi32, #tpu.memory_space<smem>>, %arg4: memref<9x2x128xf32, #tpu.memory_space<any>>, %arg5: memref<4x3x2x128xf32, #tpu.memory_space<vmem>>, %arg6: memref<4x3x!tpu.dma_semaphore, #tpu.memory_space<semaphore_mem>>) attributes {dimension_semantics = [#tpu.dimension_semantics<parallel>], iteration_bounds = array<i64: 1>, scalar_prefetch = 3 : i64, scratch_operands = 1 : i64, tpu.core_type = #tpu.core_type<tc>, window_params = [{}, {transform_indices = @transform_1, window_bounds = array<i64: 4, 3, 2, 128>}]} {
    %c4_i32 = arith.constant 4 : i32
    %0 = arith.muli %arg0, %c4_i32 : i32
    %c0_i32 = arith.constant 0 : i32
    %1 = arith.addi %0, %c0_i32 : i32
    %2 = arith.index_cast %1 : i32 to index
    %3 = memref.load %arg1[%2] : memref<4xi32, #tpu.memory_space<smem>>
    %c0_i32_0 = arith.constant 0 : i32
    %c0_i32_1 = arith.constant 0 : i32
    %c0_i32_2 = arith.constant 0 : i32
    %c0_i32_3 = arith.constant 0 : i32
    %c0_i32_4 = arith.constant 0 : i32
    %c0_i32_5 = arith.constant 0 : i32
    %4 = tpu.memref_slice %arg4[%3, %c0_i32_4, %c0_i32_5] : memref<9x2x128xf32, #tpu.memory_space<any>> -> memref<1x2x128xf32, #tpu.memory_space<any>>
    %5 = tpu.memref_squeeze %4 : memref<1x2x128xf32, #tpu.memory_space<any>> -> memref<2x128xf32, #tpu.memory_space<any>>
    %c0_i32_6 = arith.constant 0 : i32
    %c0_i32_7 = arith.constant 0 : i32
    %6 = tpu.memref_slice %arg5[%c0_i32_0, %c0_i32_1, %c0_i32_6, %c0_i32_7] : memref<4x3x2x128xf32, #tpu.memory_space<vmem>> -> memref<1x1x2x128xf32, #tpu.memory_space<vmem>>
    %7 = tpu.memref_squeeze %6 : memref<1x1x2x128xf32, #tpu.memory_space<vmem>> -> memref<2x128xf32, #tpu.memory_space<vmem>>
    %8 = tpu.memref_slice %arg6[%c0_i32_2, %c0_i32_3] : memref<4x3x!tpu.dma_semaphore, #tpu.memory_space<semaphore_mem>> -> memref<1x1x!tpu.dma_semaphore, #tpu.memory_space<semaphore_mem>>
    %9 = tpu.memref_squeeze %8 : memref<1x1x!tpu.dma_semaphore, #tpu.memory_space<semaphore_mem>> -> memref<!tpu.dma_semaphore, #tpu.memory_space<semaphore_mem>>
    tpu.enqueue_dma source(%5 : memref<2x128xf32, #tpu.memory_space<any>>) target(%7 : memref<2x128xf32, #tpu.memory_space<vmem>>) target_semaphore(%9 : memref<!tpu.dma_semaphore, #tpu.memory_space<semaphore_mem>>)
    %10 = arith.index_cast %1 : i32 to index
    %11 = memref.load %arg2[%10] : memref<4xi32, #tpu.memory_space<smem>>
    %c0_i32_8 = arith.constant 0 : i32
    %c1_i32 = arith.constant 1 : i32
    %c0_i32_9 = arith.constant 0 : i32
    %c1_i32_10 = arith.constant 1 : i32
    %c0_i32_11 = arith.constant 0 : i32
    %c0_i32_12 = arith.constant 0 : i32
    %12 = tpu.memref_slice %arg4[%11, %c0_i32_11, %c0_i32_12] : memref<9x2x128xf32, #tpu.memory_space<any>> -> memref<1x2x128xf32, #tpu.memory_space<any>>
    %13 = tpu.memref_squeeze %12 : memref<1x2x128xf32, #tpu.memory_space<any>> -> memref<2x128xf32, #tpu.memory_space<any>>
    %c0_i32_13 = arith.constant 0 : i32
    %c0_i32_14 = arith.constant 0 : i32
    %14 = tpu.memref_slice %arg5[%c0_i32_8, %c1_i32, %c0_i32_13, %c0_i32_14] : memref<4x3x2x128xf32, #tpu.memory_space<vmem>> -> memref<1x1x2x128xf32, #tpu.memory_space<vmem>>
    %15 = tpu.memref_squeeze %14 : memref<1x1x2x128xf32, #tpu.memory_space<vmem>> -> memref<2x128xf32, #tpu.memory_space<vmem>>
    %16 = tpu.memref_slice %arg6[%c0_i32_9, %c1_i32_10] : memref<4x3x!tpu.dma_semaphore, #tpu.memory_space<semaphore_mem>> -> memref<1x1x!tpu.dma_semaphore, #tpu.memory_space<semaphore_mem>>
    %17 = tpu.memref_squeeze %16 : memref<1x1x!tpu.dma_semaphore, #tpu.memory_space<semaphore_mem>> -> memref<!tpu.dma_semaphore, #tpu.memory_space<semaphore_mem>>
    tpu.enqueue_dma source(%13 : memref<2x128xf32, #tpu.memory_space<any>>) target(%15 : memref<2x128xf32, #tpu.memory_space<vmem>>) target_semaphore(%17 : memref<!tpu.dma_semaphore, #tpu.memory_space<semaphore_mem>>)
    %18 = arith.index_cast %1 : i32 to index
    %19 = memref.load %arg3[%18] : memref<4xi32, #tpu.memory_space<smem>>
    %c0_i32_15 = arith.constant 0 : i32
    %c2_i32 = arith.constant 2 : i32
    %c0_i32_16 = arith.constant 0 : i32
    %c2_i32_17 = arith.constant 2 : i32
    %c0_i32_18 = arith.constant 0 : i32
    %c0_i32_19 = arith.constant 0 : i32
    %20 = tpu.memref_slice %arg4[%19, %c0_i32_18, %c0_i32_19] : memref<9x2x128xf32, #tpu.memory_space<any>> -> memref<1x2x128xf32, #tpu.memory_space<any>>
    %21 = tpu.memref_squeeze %20 : memref<1x2x128xf32, #tpu.memory_space<any>> -> memref<2x128xf32, #tpu.memory_space<any>>
    %c0_i32_20 = arith.constant 0 : i32
    %c0_i32_21 = arith.constant 0 : i32
    %22 = tpu.memref_slice %arg5[%c0_i32_15, %c2_i32, %c0_i32_20, %c0_i32_21] : memref<4x3x2x128xf32, #tpu.memory_space<vmem>> -> memref<1x1x2x128xf32, #tpu.memory_space<vmem>>
    %23 = tpu.memref_squeeze %22 : memref<1x1x2x128xf32, #tpu.memory_space<vmem>> -> memref<2x128xf32, #tpu.memory_space<vmem>>
    %24 = tpu.memref_slice %arg6[%c0_i32_16, %c2_i32_17] : memref<4x3x!tpu.dma_semaphore, #tpu.memory_space<semaphore_mem>> -> memref<1x1x!tpu.dma_semaphore, #tpu.memory_space<semaphore_mem>>
    %25 = tpu.memref_squeeze %24 : memref<1x1x!tpu.dma_semaphore, #tpu.memory_space<semaphore_mem>> -> memref<!tpu.dma_semaphore, #tpu.memory_space<semaphore_mem>>
    tpu.enqueue_dma source(%21 : memref<2x128xf32, #tpu.memory_space<any>>) target(%23 : memref<2x128xf32, #tpu.memory_space<vmem>>) target_semaphore(%25 : memref<!tpu.dma_semaphore, #tpu.memory_space<semaphore_mem>>)
    %c1_i32_22 = arith.constant 1 : i32
    %26 = arith.addi %0, %c1_i32_22 : i32
    %27 = arith.index_cast %26 : i32 to index
    %28 = memref.load %arg1[%27] : memref<4xi32, #tpu.memory_space<smem>>
    %c1_i32_23 = arith.constant 1 : i32
    %c0_i32_24 = arith.constant 0 : i32
    %c1_i32_25 = arith.constant 1 : i32
    %c0_i32_26 = arith.constant 0 : i32
    %c0_i32_27 = arith.constant 0 : i32
    %c0_i32_28 = arith.constant 0 : i32
    %29 = tpu.memref_slice %arg4[%28, %c0_i32_27, %c0_i32_28] : memref<9x2x128xf32, #tpu.memory_space<any>> -> memref<1x2x128xf32, #tpu.memory_space<any>>
    %30 = tpu.memref_squeeze %29 : memref<1x2x128xf32, #tpu.memory_space<any>> -> memref<2x128xf32, #tpu.memory_space<any>>
    %c0_i32_29 = arith.constant 0 : i32
    %c0_i32_30 = arith.constant 0 : i32
    %31 = tpu.memref_slice %arg5[%c1_i32_23, %c0_i32_24, %c0_i32_29, %c0_i32_30] : memref<4x3x2x128xf32, #tpu.memory_space<vmem>> -> memref<1x1x2x128xf32, #tpu.memory_space<vmem>>
    %32 = tpu.memref_squeeze %31 : memref<1x1x2x128xf32, #tpu.memory_space<vmem>> -> memref<2x128xf32, #tpu.memory_space<vmem>>
    %33 = tpu.memref_slice %arg6[%c1_i32_25, %c0_i32_26] : memref<4x3x!tpu.dma_semaphore, #tpu.memory_space<semaphore_mem>> -> memref<1x1x!tpu.dma_semaphore, #tpu.memory_space<semaphore_mem>>
    %34 = tpu.memref_squeeze %33 : memref<1x1x!tpu.dma_semaphore, #tpu.memory_space<semaphore_mem>> -> memref<!tpu.dma_semaphore, #tpu.memory_space<semaphore_mem>>
    tpu.enqueue_dma source(%30 : memref<2x128xf32, #tpu.memory_space<any>>) target(%32 : memref<2x128xf32, #tpu.memory_space<vmem>>) target_semaphore(%34 : memref<!tpu.dma_semaphore, #tpu.memory_space<semaphore_mem>>)
    %35 = arith.index_cast %26 : i32 to index
    %36 = memref.load %arg2[%35] : memref<4xi32, #tpu.memory_space<smem>>
    %c1_i32_31 = arith.constant 1 : i32
    %c1_i32_32 = arith.constant 1 : i32
    %c1_i32_33 = arith.constant 1 : i32
    %c1_i32_34 = arith.constant 1 : i32
    %c0_i32_35 = arith.constant 0 : i32
    %c0_i32_36 = arith.constant 0 : i32
    %37 = tpu.memref_slice %arg4[%36, %c0_i32_35, %c0_i32_36] : memref<9x2x128xf32, #tpu.memory_space<any>> -> memref<1x2x128xf32, #tpu.memory_space<any>>
    %38 = tpu.memref_squeeze %37 : memref<1x2x128xf32, #tpu.memory_space<any>> -> memref<2x128xf32, #tpu.memory_space<any>>
    %c0_i32_37 = arith.constant 0 : i32
    %c0_i32_38 = arith.constant 0 : i32
    %39 = tpu.memref_slice %arg5[%c1_i32_31, %c1_i32_32, %c0_i32_37, %c0_i32_38] : memref<4x3x2x128xf32, #tpu.memory_space<vmem>> -> memref<1x1x2x128xf32, #tpu.memory_space<vmem>>
    %40 = tpu.memref_squeeze %39 : memref<1x1x2x128xf32, #tpu.memory_space<vmem>> -> memref<2x128xf32, #tpu.memory_space<vmem>>
    %41 = tpu.memref_slice %arg6[%c1_i32_33, %c1_i32_34] : memref<4x3x!tpu.dma_semaphore, #tpu.memory_space<semaphore_mem>> -> memref<1x1x!tpu.dma_semaphore, #tpu.memory_space<semaphore_mem>>
    %42 = tpu.memref_squeeze %41 : memref<1x1x!tpu.dma_semaphore, #tpu.memory_space<semaphore_mem>> -> memref<!tpu.dma_semaphore, #tpu.memory_space<semaphore_mem>>
    tpu.enqueue_dma source(%38 : memref<2x128xf32, #tpu.memory_space<any>>) target(%40 : memref<2x128xf32, #tpu.memory_space<vmem>>) target_semaphore(%42 : memref<!tpu.dma_semaphore, #tpu.memory_space<semaphore_mem>>)
    %43 = arith.index_cast %26 : i32 to index
    %44 = memref.load %arg3[%43] : memref<4xi32, #tpu.memory_space<smem>>
    %c1_i32_39 = arith.constant 1 : i32
    %c2_i32_40 = arith.constant 2 : i32
    %c1_i32_41 = arith.constant 1 : i32
    %c2_i32_42 = arith.constant 2 : i32
    %c0_i32_43 = arith.constant 0 : i32
    %c0_i32_44 = arith.constant 0 : i32
    %45 = tpu.memref_slice %arg4[%44, %c0_i32_43, %c0_i32_44] : memref<9x2x128xf32, #tpu.memory_space<any>> -> memref<1x2x128xf32, #tpu.memory_space<any>>
    %46 = tpu.memref_squeeze %45 : memref<1x2x128xf32, #tpu.memory_space<any>> -> memref<2x128xf32, #tpu.memory_space<any>>
    %c0_i32_45 = arith.constant 0 : i32
    %c0_i32_46 = arith.constant 0 : i32
    %47 = tpu.memref_slice %arg5[%c1_i32_39, %c2_i32_40, %c0_i32_45, %c0_i32_46] : memref<4x3x2x128xf32, #tpu.memory_space<vmem>> -> memref<1x1x2x128xf32, #tpu.memory_space<vmem>>
    %48 = tpu.memref_squeeze %47 : memref<1x1x2x128xf32, #tpu.memory_space<vmem>> -> memref<2x128xf32, #tpu.memory_space<vmem>>
    %49 = tpu.memref_slice %arg6[%c1_i32_41, %c2_i32_42] : memref<4x3x!tpu.dma_semaphore, #tpu.memory_space<semaphore_mem>> -> memref<1x1x!tpu.dma_semaphore, #tpu.memory_space<semaphore_mem>>
    %50 = tpu.memref_squeeze %49 : memref<1x1x!tpu.dma_semaphore, #tpu.memory_space<semaphore_mem>> -> memref<!tpu.dma_semaphore, #tpu.memory_space<semaphore_mem>>
    tpu.enqueue_dma source(%46 : memref<2x128xf32, #tpu.memory_space<any>>) target(%48 : memref<2x128xf32, #tpu.memory_space<vmem>>) target_semaphore(%50 : memref<!tpu.dma_semaphore, #tpu.memory_space<semaphore_mem>>)
    %c2_i32_47 = arith.constant 2 : i32
    %51 = arith.addi %0, %c2_i32_47 : i32
    %52 = arith.index_cast %51 : i32 to index
    %53 = memref.load %arg1[%52] : memref<4xi32, #tpu.memory_space<smem>>
    %c2_i32_48 = arith.constant 2 : i32
    %c0_i32_49 = arith.constant 0 : i32
    %c2_i32_50 = arith.constant 2 : i32
    %c0_i32_51 = arith.constant 0 : i32
    %c0_i32_52 = arith.constant 0 : i32
    %c0_i32_53 = arith.constant 0 : i32
    %54 = tpu.memref_slice %arg4[%53, %c0_i32_52, %c0_i32_53] : memref<9x2x128xf32, #tpu.memory_space<any>> -> memref<1x2x128xf32, #tpu.memory_space<any>>
    %55 = tpu.memref_squeeze %54 : memref<1x2x128xf32, #tpu.memory_space<any>> -> memref<2x128xf32, #tpu.memory_space<any>>
    %c0_i32_54 = arith.constant 0 : i32
    %c0_i32_55 = arith.constant 0 : i32
    %56 = tpu.memref_slice %arg5[%c2_i32_48, %c0_i32_49, %c0_i32_54, %c0_i32_55] : memref<4x3x2x128xf32, #tpu.memory_space<vmem>> -> memref<1x1x2x128xf32, #tpu.memory_space<vmem>>
    %57 = tpu.memref_squeeze %56 : memref<1x1x2x128xf32, #tpu.memory_space<vmem>> -> memref<2x128xf32, #tpu.memory_space<vmem>>
    %58 = tpu.memref_slice %arg6[%c2_i32_50, %c0_i32_51] : memref<4x3x!tpu.dma_semaphore, #tpu.memory_space<semaphore_mem>> -> memref<1x1x!tpu.dma_semaphore, #tpu.memory_space<semaphore_mem>>
    %59 = tpu.memref_squeeze %58 : memref<1x1x!tpu.dma_semaphore, #tpu.memory_space<semaphore_mem>> -> memref<!tpu.dma_semaphore, #tpu.memory_space<semaphore_mem>>
    tpu.enqueue_dma source(%55 : memref<2x128xf32, #tpu.memory_space<any>>) target(%57 : memref<2x128xf32, #tpu.memory_space<vmem>>) target_semaphore(%59 : memref<!tpu.dma_semaphore, #tpu.memory_space<semaphore_mem>>)
    %60 = arith.index_cast %51 : i32 to index
    %61 = memref.load %arg2[%60] : memref<4xi32, #tpu.memory_space<smem>>
    %c2_i32_56 = arith.constant 2 : i32
    %c1_i32_57 = arith.constant 1 : i32
    %c2_i32_58 = arith.constant 2 : i32
    %c1_i32_59 = arith.constant 1 : i32
    %c0_i32_60 = arith.constant 0 : i32
    %c0_i32_61 = arith.constant 0 : i32
    %62 = tpu.memref_slice %arg4[%61, %c0_i32_60, %c0_i32_61] : memref<9x2x128xf32, #tpu.memory_space<any>> -> memref<1x2x128xf32, #tpu.memory_space<any>>
    %63 = tpu.memref_squeeze %62 : memref<1x2x128xf32, #tpu.memory_space<any>> -> memref<2x128xf32, #tpu.memory_space<any>>
    %c0_i32_62 = arith.constant 0 : i32
    %c0_i32_63 = arith.constant 0 : i32
    %64 = tpu.memref_slice %arg5[%c2_i32_56, %c1_i32_57, %c0_i32_62, %c0_i32_63] : memref<4x3x2x128xf32, #tpu.memory_space<vmem>> -> memref<1x1x2x128xf32, #tpu.memory_space<vmem>>
    %65 = tpu.memref_squeeze %64 : memref<1x1x2x128xf32, #tpu.memory_space<vmem>> -> memref<2x128xf32, #tpu.memory_space<vmem>>
    %66 = tpu.memref_slice %arg6[%c2_i32_58, %c1_i32_59] : memref<4x3x!tpu.dma_semaphore, #tpu.memory_space<semaphore_mem>> -> memref<1x1x!tpu.dma_semaphore, #tpu.memory_space<semaphore_mem>>
    %67 = tpu.memref_squeeze %66 : memref<1x1x!tpu.dma_semaphore, #tpu.memory_space<semaphore_mem>> -> memref<!tpu.dma_semaphore, #tpu.memory_space<semaphore_mem>>
    tpu.enqueue_dma source(%63 : memref<2x128xf32, #tpu.memory_space<any>>) target(%65 : memref<2x128xf32, #tpu.memory_space<vmem>>) target_semaphore(%67 : memref<!tpu.dma_semaphore, #tpu.memory_space<semaphore_mem>>)
    %68 = arith.index_cast %51 : i32 to index
    %69 = memref.load %arg3[%68] : memref<4xi32, #tpu.memory_space<smem>>
    %c2_i32_64 = arith.constant 2 : i32
    %c2_i32_65 = arith.constant 2 : i32
    %c2_i32_66 = arith.constant 2 : i32
    %c2_i32_67 = arith.constant 2 : i32
    %c0_i32_68 = arith.constant 0 : i32
    %c0_i32_69 = arith.constant 0 : i32
    %70 = tpu.memref_slice %arg4[%69, %c0_i32_68, %c0_i32_69] : memref<9x2x128xf32, #tpu.memory_space<any>> -> memref<1x2x128xf32, #tpu.memory_space<any>>
    %71 = tpu.memref_squeeze %70 : memref<1x2x128xf32, #tpu.memory_space<any>> -> memref<2x128xf32, #tpu.memory_space<any>>
    %c0_i32_70 = arith.constant 0 : i32
    %c0_i32_71 = arith.constant 0 : i32
    %72 = tpu.memref_slice %arg5[%c2_i32_64, %c2_i32_65, %c0_i32_70, %c0_i32_71] : memref<4x3x2x128xf32, #tpu.memory_space<vmem>> -> memref<1x1x2x128xf32, #tpu.memory_space<vmem>>
    %73 = tpu.memref_squeeze %72 : memref<1x1x2x128xf32, #tpu.memory_space<vmem>> -> memref<2x128xf32, #tpu.memory_space<vmem>>
    %74 = tpu.memref_slice %arg6[%c2_i32_66, %c2_i32_67] : memref<4x3x!tpu.dma_semaphore, #tpu.memory_space<semaphore_mem>> -> memref<1x1x!tpu.dma_semaphore, #tpu.memory_space<semaphore_mem>>
    %75 = tpu.memref_squeeze %74 : memref<1x1x!tpu.dma_semaphore, #tpu.memory_space<semaphore_mem>> -> memref<!tpu.dma_semaphore, #tpu.memory_space<semaphore_mem>>
    tpu.enqueue_dma source(%71 : memref<2x128xf32, #tpu.memory_space<any>>) target(%73 : memref<2x128xf32, #tpu.memory_space<vmem>>) target_semaphore(%75 : memref<!tpu.dma_semaphore, #tpu.memory_space<semaphore_mem>>)
    %c3_i32 = arith.constant 3 : i32
    %76 = arith.addi %0, %c3_i32 : i32
    %77 = arith.index_cast %76 : i32 to index
    %78 = memref.load %arg1[%77] : memref<4xi32, #tpu.memory_space<smem>>
    %c3_i32_72 = arith.constant 3 : i32
    %c0_i32_73 = arith.constant 0 : i32
    %c3_i32_74 = arith.constant 3 : i32
    %c0_i32_75 = arith.constant 0 : i32
    %c0_i32_76 = arith.constant 0 : i32
    %c0_i32_77 = arith.constant 0 : i32
    %79 = tpu.memref_slice %arg4[%78, %c0_i32_76, %c0_i32_77] : memref<9x2x128xf32, #tpu.memory_space<any>> -> memref<1x2x128xf32, #tpu.memory_space<any>>
    %80 = tpu.memref_squeeze %79 : memref<1x2x128xf32, #tpu.memory_space<any>> -> memref<2x128xf32, #tpu.memory_space<any>>
    %c0_i32_78 = arith.constant 0 : i32
    %c0_i32_79 = arith.constant 0 : i32
    %81 = tpu.memref_slice %arg5[%c3_i32_72, %c0_i32_73, %c0_i32_78, %c0_i32_79] : memref<4x3x2x128xf32, #tpu.memory_space<vmem>> -> memref<1x1x2x128xf32, #tpu.memory_space<vmem>>
    %82 = tpu.memref_squeeze %81 : memref<1x1x2x128xf32, #tpu.memory_space<vmem>> -> memref<2x128xf32, #tpu.memory_space<vmem>>
    %83 = tpu.memref_slice %arg6[%c3_i32_74, %c0_i32_75] : memref<4x3x!tpu.dma_semaphore, #tpu.memory_space<semaphore_mem>> -> memref<1x1x!tpu.dma_semaphore, #tpu.memory_space<semaphore_mem>>
    %84 = tpu.memref_squeeze %83 : memref<1x1x!tpu.dma_semaphore, #tpu.memory_space<semaphore_mem>> -> memref<!tpu.dma_semaphore, #tpu.memory_space<semaphore_mem>>
    tpu.enqueue_dma source(%80 : memref<2x128xf32, #tpu.memory_space<any>>) target(%82 : memref<2x128xf32, #tpu.memory_space<vmem>>) target_semaphore(%84 : memref<!tpu.dma_semaphore, #tpu.memory_space<semaphore_mem>>)
    %85 = arith.index_cast %76 : i32 to index
    %86 = memref.load %arg2[%85] : memref<4xi32, #tpu.memory_space<smem>>
    %c3_i32_80 = arith.constant 3 : i32
    %c1_i32_81 = arith.constant 1 : i32
    %c3_i32_82 = arith.constant 3 : i32
    %c1_i32_83 = arith.constant 1 : i32
    %c0_i32_84 = arith.constant 0 : i32
    %c0_i32_85 = arith.constant 0 : i32
    %87 = tpu.memref_slice %arg4[%86, %c0_i32_84, %c0_i32_85] : memref<9x2x128xf32, #tpu.memory_space<any>> -> memref<1x2x128xf32, #tpu.memory_space<any>>
    %88 = tpu.memref_squeeze %87 : memref<1x2x128xf32, #tpu.memory_space<any>> -> memref<2x128xf32, #tpu.memory_space<any>>
    %c0_i32_86 = arith.constant 0 : i32
    %c0_i32_87 = arith.constant 0 : i32
    %89 = tpu.memref_slice %arg5[%c3_i32_80, %c1_i32_81, %c0_i32_86, %c0_i32_87] : memref<4x3x2x128xf32, #tpu.memory_space<vmem>> -> memref<1x1x2x128xf32, #tpu.memory_space<vmem>>
    %90 = tpu.memref_squeeze %89 : memref<1x1x2x128xf32, #tpu.memory_space<vmem>> -> memref<2x128xf32, #tpu.memory_space<vmem>>
    %91 = tpu.memref_slice %arg6[%c3_i32_82, %c1_i32_83] : memref<4x3x!tpu.dma_semaphore, #tpu.memory_space<semaphore_mem>> -> memref<1x1x!tpu.dma_semaphore, #tpu.memory_space<semaphore_mem>>
    %92 = tpu.memref_squeeze %91 : memref<1x1x!tpu.dma_semaphore, #tpu.memory_space<semaphore_mem>> -> memref<!tpu.dma_semaphore, #tpu.memory_space<semaphore_mem>>
    tpu.enqueue_dma source(%88 : memref<2x128xf32, #tpu.memory_space<any>>) target(%90 : memref<2x128xf32, #tpu.memory_space<vmem>>) target_semaphore(%92 : memref<!tpu.dma_semaphore, #tpu.memory_space<semaphore_mem>>)
    %93 = arith.index_cast %76 : i32 to index
    %94 = memref.load %arg3[%93] : memref<4xi32, #tpu.memory_space<smem>>
    %c3_i32_88 = arith.constant 3 : i32
    %c2_i32_89 = arith.constant 2 : i32
    %c3_i32_90 = arith.constant 3 : i32
    %c2_i32_91 = arith.constant 2 : i32
    %c0_i32_92 = arith.constant 0 : i32
    %c0_i32_93 = arith.constant 0 : i32
    %95 = tpu.memref_slice %arg4[%94, %c0_i32_92, %c0_i32_93] : memref<9x2x128xf32, #tpu.memory_space<any>> -> memref<1x2x128xf32, #tpu.memory_space<any>>
    %96 = tpu.memref_squeeze %95 : memref<1x2x128xf32, #tpu.memory_space<any>> -> memref<2x128xf32, #tpu.memory_space<any>>
    %c0_i32_94 = arith.constant 0 : i32
    %c0_i32_95 = arith.constant 0 : i32
    %97 = tpu.memref_slice %arg5[%c3_i32_88, %c2_i32_89, %c0_i32_94, %c0_i32_95] : memref<4x3x2x128xf32, #tpu.memory_space<vmem>> -> memref<1x1x2x128xf32, #tpu.memory_space<vmem>>
    %98 = tpu.memref_squeeze %97 : memref<1x1x2x128xf32, #tpu.memory_space<vmem>> -> memref<2x128xf32, #tpu.memory_space<vmem>>
    %99 = tpu.memref_slice %arg6[%c3_i32_90, %c2_i32_91] : memref<4x3x!tpu.dma_semaphore, #tpu.memory_space<semaphore_mem>> -> memref<1x1x!tpu.dma_semaphore, #tpu.memory_space<semaphore_mem>>
    %100 = tpu.memref_squeeze %99 : memref<1x1x!tpu.dma_semaphore, #tpu.memory_space<semaphore_mem>> -> memref<!tpu.dma_semaphore, #tpu.memory_space<semaphore_mem>>
    tpu.enqueue_dma source(%96 : memref<2x128xf32, #tpu.memory_space<any>>) target(%98 : memref<2x128xf32, #tpu.memory_space<vmem>>) target_semaphore(%100 : memref<!tpu.dma_semaphore, #tpu.memory_space<semaphore_mem>>)
    %c0_i32_96 = arith.constant 0 : i32
    %c0_i32_97 = arith.constant 0 : i32
    %c0_i32_98 = arith.constant 0 : i32
    %c0_i32_99 = arith.constant 0 : i32
    %c0_i32_100 = arith.constant 0 : i32
    %c0_i32_101 = arith.constant 0 : i32
    %101 = tpu.memref_slice %arg4[%3, %c0_i32_100, %c0_i32_101] : memref<9x2x128xf32, #tpu.memory_space<any>> -> memref<1x2x128xf32, #tpu.memory_space<any>>
    %102 = tpu.memref_squeeze %101 : memref<1x2x128xf32, #tpu.memory_space<any>> -> memref<2x128xf32, #tpu.memory_space<any>>
    %c0_i32_102 = arith.constant 0 : i32
    %c0_i32_103 = arith.constant 0 : i32
    %103 = tpu.memref_slice %arg5[%c0_i32_96, %c0_i32_97, %c0_i32_102, %c0_i32_103] : memref<4x3x2x128xf32, #tpu.memory_space<vmem>> -> memref<1x1x2x128xf32, #tpu.memory_space<vmem>>
    %104 = tpu.memref_squeeze %103 : memref<1x1x2x128xf32, #tpu.memory_space<vmem>> -> memref<2x128xf32, #tpu.memory_space<vmem>>
    %105 = tpu.memref_slice %arg6[%c0_i32_98, %c0_i32_99] : memref<4x3x!tpu.dma_semaphore, #tpu.memory_space<semaphore_mem>> -> memref<1x1x!tpu.dma_semaphore, #tpu.memory_space<semaphore_mem>>
    %106 = tpu.memref_squeeze %105 : memref<1x1x!tpu.dma_semaphore, #tpu.memory_space<semaphore_mem>> -> memref<!tpu.dma_semaphore, #tpu.memory_space<semaphore_mem>>
    tpu.wait_dma2 semaphore(%106 : memref<!tpu.dma_semaphore, #tpu.memory_space<semaphore_mem>>) src(%102 : memref<2x128xf32, #tpu.memory_space<any>>) dst(%104 : memref<2x128xf32, #tpu.memory_space<vmem>>)
    %c0_i32_104 = arith.constant 0 : i32
    %c1_i32_105 = arith.constant 1 : i32
    %c0_i32_106 = arith.constant 0 : i32
    %c1_i32_107 = arith.constant 1 : i32
    %c0_i32_108 = arith.constant 0 : i32
    %c0_i32_109 = arith.constant 0 : i32
    %107 = tpu.memref_slice %arg4[%11, %c0_i32_108, %c0_i32_109] : memref<9x2x128xf32, #tpu.memory_space<any>> -> memref<1x2x128xf32, #tpu.memory_space<any>>
    %108 = tpu.memref_squeeze %107 : memref<1x2x128xf32, #tpu.memory_space<any>> -> memref<2x128xf32, #tpu.memory_space<any>>
    %c0_i32_110 = arith.constant 0 : i32
    %c0_i32_111 = arith.constant 0 : i32
    %109 = tpu.memref_slice %arg5[%c0_i32_104, %c1_i32_105, %c0_i32_110, %c0_i32_111] : memref<4x3x2x128xf32, #tpu.memory_space<vmem>> -> memref<1x1x2x128xf32, #tpu.memory_space<vmem>>
    %110 = tpu.memref_squeeze %109 : memref<1x1x2x128xf32, #tpu.memory_space<vmem>> -> memref<2x128xf32, #tpu.memory_space<vmem>>
    %111 = tpu.memref_slice %arg6[%c0_i32_106, %c1_i32_107] : memref<4x3x!tpu.dma_semaphore, #tpu.memory_space<semaphore_mem>> -> memref<1x1x!tpu.dma_semaphore, #tpu.memory_space<semaphore_mem>>
    %112 = tpu.memref_squeeze %111 : memref<1x1x!tpu.dma_semaphore, #tpu.memory_space<semaphore_mem>> -> memref<!tpu.dma_semaphore, #tpu.memory_space<semaphore_mem>>
    tpu.wait_dma2 semaphore(%112 : memref<!tpu.dma_semaphore, #tpu.memory_space<semaphore_mem>>) src(%108 : memref<2x128xf32, #tpu.memory_space<any>>) dst(%110 : memref<2x128xf32, #tpu.memory_space<vmem>>)
    %c0_i32_112 = arith.constant 0 : i32
    %c2_i32_113 = arith.constant 2 : i32
    %c0_i32_114 = arith.constant 0 : i32
    %c2_i32_115 = arith.constant 2 : i32
    %c0_i32_116 = arith.constant 0 : i32
    %c0_i32_117 = arith.constant 0 : i32
    %113 = tpu.memref_slice %arg4[%19, %c0_i32_116, %c0_i32_117] : memref<9x2x128xf32, #tpu.memory_space<any>> -> memref<1x2x128xf32, #tpu.memory_space<any>>
    %114 = tpu.memref_squeeze %113 : memref<1x2x128xf32, #tpu.memory_space<any>> -> memref<2x128xf32, #tpu.memory_space<any>>
    %c0_i32_118 = arith.constant 0 : i32
    %c0_i32_119 = arith.constant 0 : i32
    %115 = tpu.memref_slice %arg5[%c0_i32_112, %c2_i32_113, %c0_i32_118, %c0_i32_119] : memref<4x3x2x128xf32, #tpu.memory_space<vmem>> -> memref<1x1x2x128xf32, #tpu.memory_space<vmem>>
    %116 = tpu.memref_squeeze %115 : memref<1x1x2x128xf32, #tpu.memory_space<vmem>> -> memref<2x128xf32, #tpu.memory_space<vmem>>
    %117 = tpu.memref_slice %arg6[%c0_i32_114, %c2_i32_115] : memref<4x3x!tpu.dma_semaphore, #tpu.memory_space<semaphore_mem>> -> memref<1x1x!tpu.dma_semaphore, #tpu.memory_space<semaphore_mem>>
    %118 = tpu.memref_squeeze %117 : memref<1x1x!tpu.dma_semaphore, #tpu.memory_space<semaphore_mem>> -> memref<!tpu.dma_semaphore, #tpu.memory_space<semaphore_mem>>
    tpu.wait_dma2 semaphore(%118 : memref<!tpu.dma_semaphore, #tpu.memory_space<semaphore_mem>>) src(%114 : memref<2x128xf32, #tpu.memory_space<any>>) dst(%116 : memref<2x128xf32, #tpu.memory_space<vmem>>)
    %c1_i32_120 = arith.constant 1 : i32
    %c0_i32_121 = arith.constant 0 : i32
    %c1_i32_122 = arith.constant 1 : i32
    %c0_i32_123 = arith.constant 0 : i32
    %c0_i32_124 = arith.constant 0 : i32
    %c0_i32_125 = arith.constant 0 : i32
    %119 = tpu.memref_slice %arg4[%28, %c0_i32_124, %c0_i32_125] : memref<9x2x128xf32, #tpu.memory_space<any>> -> memref<1x2x128xf32, #tpu.memory_space<any>>
    %120 = tpu.memref_squeeze %119 : memref<1x2x128xf32, #tpu.memory_space<any>> -> memref<2x128xf32, #tpu.memory_space<any>>
    %c0_i32_126 = arith.constant 0 : i32
    %c0_i32_127 = arith.constant 0 : i32
    %121 = tpu.memref_slice %arg5[%c1_i32_120, %c0_i32_121, %c0_i32_126, %c0_i32_127] : memref<4x3x2x128xf32, #tpu.memory_space<vmem>> -> memref<1x1x2x128xf32, #tpu.memory_space<vmem>>
    %122 = tpu.memref_squeeze %121 : memref<1x1x2x128xf32, #tpu.memory_space<vmem>> -> memref<2x128xf32, #tpu.memory_space<vmem>>
    %123 = tpu.memref_slice %arg6[%c1_i32_122, %c0_i32_123] : memref<4x3x!tpu.dma_semaphore, #tpu.memory_space<semaphore_mem>> -> memref<1x1x!tpu.dma_semaphore, #tpu.memory_space<semaphore_mem>>
    %124 = tpu.memref_squeeze %123 : memref<1x1x!tpu.dma_semaphore, #tpu.memory_space<semaphore_mem>> -> memref<!tpu.dma_semaphore, #tpu.memory_space<semaphore_mem>>
    tpu.wait_dma2 semaphore(%124 : memref<!tpu.dma_semaphore, #tpu.memory_space<semaphore_mem>>) src(%120 : memref<2x128xf32, #tpu.memory_space<any>>) dst(%122 : memref<2x128xf32, #tpu.memory_space<vmem>>)
    %c1_i32_128 = arith.constant 1 : i32
    %c1_i32_129 = arith.constant 1 : i32
    %c1_i32_130 = arith.constant 1 : i32
    %c1_i32_131 = arith.constant 1 : i32
    %c0_i32_132 = arith.constant 0 : i32
    %c0_i32_133 = arith.constant 0 : i32
    %125 = tpu.memref_slice %arg4[%36, %c0_i32_132, %c0_i32_133] : memref<9x2x128xf32, #tpu.memory_space<any>> -> memref<1x2x128xf32, #tpu.memory_space<any>>
    %126 = tpu.memref_squeeze %125 : memref<1x2x128xf32, #tpu.memory_space<any>> -> memref<2x128xf32, #tpu.memory_space<any>>
    %c0_i32_134 = arith.constant 0 : i32
    %c0_i32_135 = arith.constant 0 : i32
    %127 = tpu.memref_slice %arg5[%c1_i32_128, %c1_i32_129, %c0_i32_134, %c0_i32_135] : memref<4x3x2x128xf32, #tpu.memory_space<vmem>> -> memref<1x1x2x128xf32, #tpu.memory_space<vmem>>
    %128 = tpu.memref_squeeze %127 : memref<1x1x2x128xf32, #tpu.memory_space<vmem>> -> memref<2x128xf32, #tpu.memory_space<vmem>>
    %129 = tpu.memref_slice %arg6[%c1_i32_130, %c1_i32_131] : memref<4x3x!tpu.dma_semaphore, #tpu.memory_space<semaphore_mem>> -> memref<1x1x!tpu.dma_semaphore, #tpu.memory_space<semaphore_mem>>
    %130 = tpu.memref_squeeze %129 : memref<1x1x!tpu.dma_semaphore, #tpu.memory_space<semaphore_mem>> -> memref<!tpu.dma_semaphore, #tpu.memory_space<semaphore_mem>>
    tpu.wait_dma2 semaphore(%130 : memref<!tpu.dma_semaphore, #tpu.memory_space<semaphore_mem>>) src(%126 : memref<2x128xf32, #tpu.memory_space<any>>) dst(%128 : memref<2x128xf32, #tpu.memory_space<vmem>>)
    %c1_i32_136 = arith.constant 1 : i32
    %c2_i32_137 = arith.constant 2 : i32
    %c1_i32_138 = arith.constant 1 : i32
    %c2_i32_139 = arith.constant 2 : i32
    %c0_i32_140 = arith.constant 0 : i32
    %c0_i32_141 = arith.constant 0 : i32
    %131 = tpu.memref_slice %arg4[%44, %c0_i32_140, %c0_i32_141] : memref<9x2x128xf32, #tpu.memory_space<any>> -> memref<1x2x128xf32, #tpu.memory_space<any>>
    %132 = tpu.memref_squeeze %131 : memref<1x2x128xf32, #tpu.memory_space<any>> -> memref<2x128xf32, #tpu.memory_space<any>>
    %c0_i32_142 = arith.constant 0 : i32
    %c0_i32_143 = arith.constant 0 : i32
    %133 = tpu.memref_slice %arg5[%c1_i32_136, %c2_i32_137, %c0_i32_142, %c0_i32_143] : memref<4x3x2x128xf32, #tpu.memory_space<vmem>> -> memref<1x1x2x128xf32, #tpu.memory_space<vmem>>
    %134 = tpu.memref_squeeze %133 : memref<1x1x2x128xf32, #tpu.memory_space<vmem>> -> memref<2x128xf32, #tpu.memory_space<vmem>>
    %135 = tpu.memref_slice %arg6[%c1_i32_138, %c2_i32_139] : memref<4x3x!tpu.dma_semaphore, #tpu.memory_space<semaphore_mem>> -> memref<1x1x!tpu.dma_semaphore, #tpu.memory_space<semaphore_mem>>
    %136 = tpu.memref_squeeze %135 : memref<1x1x!tpu.dma_semaphore, #tpu.memory_space<semaphore_mem>> -> memref<!tpu.dma_semaphore, #tpu.memory_space<semaphore_mem>>
    tpu.wait_dma2 semaphore(%136 : memref<!tpu.dma_semaphore, #tpu.memory_space<semaphore_mem>>) src(%132 : memref<2x128xf32, #tpu.memory_space<any>>) dst(%134 : memref<2x128xf32, #tpu.memory_space<vmem>>)
    %c2_i32_144 = arith.constant 2 : i32
    %c0_i32_145 = arith.constant 0 : i32
    %c2_i32_146 = arith.constant 2 : i32
    %c0_i32_147 = arith.constant 0 : i32
    %c0_i32_148 = arith.constant 0 : i32
    %c0_i32_149 = arith.constant 0 : i32
    %137 = tpu.memref_slice %arg4[%53, %c0_i32_148, %c0_i32_149] : memref<9x2x128xf32, #tpu.memory_space<any>> -> memref<1x2x128xf32, #tpu.memory_space<any>>
    %138 = tpu.memref_squeeze %137 : memref<1x2x128xf32, #tpu.memory_space<any>> -> memref<2x128xf32, #tpu.memory_space<any>>
    %c0_i32_150 = arith.constant 0 : i32
    %c0_i32_151 = arith.constant 0 : i32
    %139 = tpu.memref_slice %arg5[%c2_i32_144, %c0_i32_145, %c0_i32_150, %c0_i32_151] : memref<4x3x2x128xf32, #tpu.memory_space<vmem>> -> memref<1x1x2x128xf32, #tpu.memory_space<vmem>>
    %140 = tpu.memref_squeeze %139 : memref<1x1x2x128xf32, #tpu.memory_space<vmem>> -> memref<2x128xf32, #tpu.memory_space<vmem>>
    %141 = tpu.memref_slice %arg6[%c2_i32_146, %c0_i32_147] : memref<4x3x!tpu.dma_semaphore, #tpu.memory_space<semaphore_mem>> -> memref<1x1x!tpu.dma_semaphore, #tpu.memory_space<semaphore_mem>>
    %142 = tpu.memref_squeeze %141 : memref<1x1x!tpu.dma_semaphore, #tpu.memory_space<semaphore_mem>> -> memref<!tpu.dma_semaphore, #tpu.memory_space<semaphore_mem>>
    tpu.wait_dma2 semaphore(%142 : memref<!tpu.dma_semaphore, #tpu.memory_space<semaphore_mem>>) src(%138 : memref<2x128xf32, #tpu.memory_space<any>>) dst(%140 : memref<2x128xf32, #tpu.memory_space<vmem>>)
    %c2_i32_152 = arith.constant 2 : i32
    %c1_i32_153 = arith.constant 1 : i32
    %c2_i32_154 = arith.constant 2 : i32
    %c1_i32_155 = arith.constant 1 : i32
    %c0_i32_156 = arith.constant 0 : i32
    %c0_i32_157 = arith.constant 0 : i32
    %143 = tpu.memref_slice %arg4[%61, %c0_i32_156, %c0_i32_157] : memref<9x2x128xf32, #tpu.memory_space<any>> -> memref<1x2x128xf32, #tpu.memory_space<any>>
    %144 = tpu.memref_squeeze %143 : memref<1x2x128xf32, #tpu.memory_space<any>> -> memref<2x128xf32, #tpu.memory_space<any>>
    %c0_i32_158 = arith.constant 0 : i32
    %c0_i32_159 = arith.constant 0 : i32
    %145 = tpu.memref_slice %arg5[%c2_i32_152, %c1_i32_153, %c0_i32_158, %c0_i32_159] : memref<4x3x2x128xf32, #tpu.memory_space<vmem>> -> memref<1x1x2x128xf32, #tpu.memory_space<vmem>>
    %146 = tpu.memref_squeeze %145 : memref<1x1x2x128xf32, #tpu.memory_space<vmem>> -> memref<2x128xf32, #tpu.memory_space<vmem>>
    %147 = tpu.memref_slice %arg6[%c2_i32_154, %c1_i32_155] : memref<4x3x!tpu.dma_semaphore, #tpu.memory_space<semaphore_mem>> -> memref<1x1x!tpu.dma_semaphore, #tpu.memory_space<semaphore_mem>>
    %148 = tpu.memref_squeeze %147 : memref<1x1x!tpu.dma_semaphore, #tpu.memory_space<semaphore_mem>> -> memref<!tpu.dma_semaphore, #tpu.memory_space<semaphore_mem>>
    tpu.wait_dma2 semaphore(%148 : memref<!tpu.dma_semaphore, #tpu.memory_space<semaphore_mem>>) src(%144 : memref<2x128xf32, #tpu.memory_space<any>>) dst(%146 : memref<2x128xf32, #tpu.memory_space<vmem>>)
    %c2_i32_160 = arith.constant 2 : i32
    %c2_i32_161 = arith.constant 2 : i32
    %c2_i32_162 = arith.constant 2 : i32
    %c2_i32_163 = arith.constant 2 : i32
    %c0_i32_164 = arith.constant 0 : i32
    %c0_i32_165 = arith.constant 0 : i32
    %149 = tpu.memref_slice %arg4[%69, %c0_i32_164, %c0_i32_165] : memref<9x2x128xf32, #tpu.memory_space<any>> -> memref<1x2x128xf32, #tpu.memory_space<any>>
    %150 = tpu.memref_squeeze %149 : memref<1x2x128xf32, #tpu.memory_space<any>> -> memref<2x128xf32, #tpu.memory_space<any>>
    %c0_i32_166 = arith.constant 0 : i32
    %c0_i32_167 = arith.constant 0 : i32
    %151 = tpu.memref_slice %arg5[%c2_i32_160, %c2_i32_161, %c0_i32_166, %c0_i32_167] : memref<4x3x2x128xf32, #tpu.memory_space<vmem>> -> memref<1x1x2x128xf32, #tpu.memory_space<vmem>>
    %152 = tpu.memref_squeeze %151 : memref<1x1x2x128xf32, #tpu.memory_space<vmem>> -> memref<2x128xf32, #tpu.memory_space<vmem>>
    %153 = tpu.memref_slice %arg6[%c2_i32_162, %c2_i32_163] : memref<4x3x!tpu.dma_semaphore, #tpu.memory_space<semaphore_mem>> -> memref<1x1x!tpu.dma_semaphore, #tpu.memory_space<semaphore_mem>>
    %154 = tpu.memref_squeeze %153 : memref<1x1x!tpu.dma_semaphore, #tpu.memory_space<semaphore_mem>> -> memref<!tpu.dma_semaphore, #tpu.memory_space<semaphore_mem>>
    tpu.wait_dma2 semaphore(%154 : memref<!tpu.dma_semaphore, #tpu.memory_space<semaphore_mem>>) src(%150 : memref<2x128xf32, #tpu.memory_space<any>>) dst(%152 : memref<2x128xf32, #tpu.memory_space<vmem>>)
    %c3_i32_168 = arith.constant 3 : i32
    %c0_i32_169 = arith.constant 0 : i32
    %c3_i32_170 = arith.constant 3 : i32
    %c0_i32_171 = arith.constant 0 : i32
    %c0_i32_172 = arith.constant 0 : i32
    %c0_i32_173 = arith.constant 0 : i32
    %155 = tpu.memref_slice %arg4[%78, %c0_i32_172, %c0_i32_173] : memref<9x2x128xf32, #tpu.memory_space<any>> -> memref<1x2x128xf32, #tpu.memory_space<any>>
    %156 = tpu.memref_squeeze %155 : memref<1x2x128xf32, #tpu.memory_space<any>> -> memref<2x128xf32, #tpu.memory_space<any>>
    %c0_i32_174 = arith.constant 0 : i32
    %c0_i32_175 = arith.constant 0 : i32
    %157 = tpu.memref_slice %arg5[%c3_i32_168, %c0_i32_169, %c0_i32_174, %c0_i32_175] : memref<4x3x2x128xf32, #tpu.memory_space<vmem>> -> memref<1x1x2x128xf32, #tpu.memory_space<vmem>>
    %158 = tpu.memref_squeeze %157 : memref<1x1x2x128xf32, #tpu.memory_space<vmem>> -> memref<2x128xf32, #tpu.memory_space<vmem>>
    %159 = tpu.memref_slice %arg6[%c3_i32_170, %c0_i32_171] : memref<4x3x!tpu.dma_semaphore, #tpu.memory_space<semaphore_mem>> -> memref<1x1x!tpu.dma_semaphore, #tpu.memory_space<semaphore_mem>>
    %160 = tpu.memref_squeeze %159 : memref<1x1x!tpu.dma_semaphore, #tpu.memory_space<semaphore_mem>> -> memref<!tpu.dma_semaphore, #tpu.memory_space<semaphore_mem>>
    tpu.wait_dma2 semaphore(%160 : memref<!tpu.dma_semaphore, #tpu.memory_space<semaphore_mem>>) src(%156 : memref<2x128xf32, #tpu.memory_space<any>>) dst(%158 : memref<2x128xf32, #tpu.memory_space<vmem>>)
    %c3_i32_176 = arith.constant 3 : i32
    %c1_i32_177 = arith.constant 1 : i32
    %c3_i32_178 = arith.constant 3 : i32
    %c1_i32_179 = arith.constant 1 : i32
    %c0_i32_180 = arith.constant 0 : i32
    %c0_i32_181 = arith.constant 0 : i32
    %161 = tpu.memref_slice %arg4[%86, %c0_i32_180, %c0_i32_181] : memref<9x2x128xf32, #tpu.memory_space<any>> -> memref<1x2x128xf32, #tpu.memory_space<any>>
    %162 = tpu.memref_squeeze %161 : memref<1x2x128xf32, #tpu.memory_space<any>> -> memref<2x128xf32, #tpu.memory_space<any>>
    %c0_i32_182 = arith.constant 0 : i32
    %c0_i32_183 = arith.constant 0 : i32
    %163 = tpu.memref_slice %arg5[%c3_i32_176, %c1_i32_177, %c0_i32_182, %c0_i32_183] : memref<4x3x2x128xf32, #tpu.memory_space<vmem>> -> memref<1x1x2x128xf32, #tpu.memory_space<vmem>>
    %164 = tpu.memref_squeeze %163 : memref<1x1x2x128xf32, #tpu.memory_space<vmem>> -> memref<2x128xf32, #tpu.memory_space<vmem>>
    %165 = tpu.memref_slice %arg6[%c3_i32_178, %c1_i32_179] : memref<4x3x!tpu.dma_semaphore, #tpu.memory_space<semaphore_mem>> -> memref<1x1x!tpu.dma_semaphore, #tpu.memory_space<semaphore_mem>>
    %166 = tpu.memref_squeeze %165 : memref<1x1x!tpu.dma_semaphore, #tpu.memory_space<semaphore_mem>> -> memref<!tpu.dma_semaphore, #tpu.memory_space<semaphore_mem>>
    tpu.wait_dma2 semaphore(%166 : memref<!tpu.dma_semaphore, #tpu.memory_space<semaphore_mem>>) src(%162 : memref<2x128xf32, #tpu.memory_space<any>>) dst(%164 : memref<2x128xf32, #tpu.memory_space<vmem>>)
    %c3_i32_184 = arith.constant 3 : i32
    %c2_i32_185 = arith.constant 2 : i32
    %c3_i32_186 = arith.constant 3 : i32
    %c2_i32_187 = arith.constant 2 : i32
    %c0_i32_188 = arith.constant 0 : i32
    %c0_i32_189 = arith.constant 0 : i32
    %167 = tpu.memref_slice %arg4[%94, %c0_i32_188, %c0_i32_189] : memref<9x2x128xf32, #tpu.memory_space<any>> -> memref<1x2x128xf32, #tpu.memory_space<any>>
    %168 = tpu.memref_squeeze %167 : memref<1x2x128xf32, #tpu.memory_space<any>> -> memref<2x128xf32, #tpu.memory_space<any>>
    %c0_i32_190 = arith.constant 0 : i32
    %c0_i32_191 = arith.constant 0 : i32
    %169 = tpu.memref_slice %arg5[%c3_i32_184, %c2_i32_185, %c0_i32_190, %c0_i32_191] : memref<4x3x2x128xf32, #tpu.memory_space<vmem>> -> memref<1x1x2x128xf32, #tpu.memory_space<vmem>>
    %170 = tpu.memref_squeeze %169 : memref<1x1x2x128xf32, #tpu.memory_space<vmem>> -> memref<2x128xf32, #tpu.memory_space<vmem>>
    %171 = tpu.memref_slice %arg6[%c3_i32_186, %c2_i32_187] : memref<4x3x!tpu.dma_semaphore, #tpu.memory_space<semaphore_mem>> -> memref<1x1x!tpu.dma_semaphore, #tpu.memory_space<semaphore_mem>>
    %172 = tpu.memref_squeeze %171 : memref<1x1x!tpu.dma_semaphore, #tpu.memory_space<semaphore_mem>> -> memref<!tpu.dma_semaphore, #tpu.memory_space<semaphore_mem>>
    tpu.wait_dma2 semaphore(%172 : memref<!tpu.dma_semaphore, #tpu.memory_space<semaphore_mem>>) src(%168 : memref<2x128xf32, #tpu.memory_space<any>>) dst(%170 : memref<2x128xf32, #tpu.memory_space<vmem>>)
    return
  }
  func.func @transform_1(%arg0: i32, %arg1: memref<4xi32, #tpu.memory_space<smem>>, %arg2: memref<4xi32, #tpu.memory_space<smem>>, %arg3: memref<4xi32, #tpu.memory_space<smem>>) -> (i32, i32, i32, i32) {
    %c0_i32 = arith.constant 0 : i32
    %c0_i32_0 = arith.constant 0 : i32
    %c0_i32_1 = arith.constant 0 : i32
    %c0_i32_2 = arith.constant 0 : i32
    return %arg0, %c0_i32, %c0_i32_0, %c0_i32_1 : i32, i32, i32, i32
  }
}

</mosaic_0001>

<llo_original>
// kernel: tpu_custom_call.1
$region0: #{tpu_custom_call.1}
  #allocation0 [shape = 'u32[]', space=smem, size = 0x4, offset = 0x4, fixed_abs, tag = 'smem constant byte address 0x4 - core index']
  #allocation1 [shape = 'u32[144,128]{1,0:T(1,128)}', space=vmem, size = 0x12000, scoped, tag = 'internal scratch']
  #allocation2 [shape = 's32[12]{0}', space=sflag, size = 0x30, scoped, tag = 'scratch operand']
  #allocation3 [shape = 's32[1]{0}', space=sflag, size = 0x4, scoped, tag = 'scoped memory for tpu_custom_call.1']
  #allocation4 [shape = 'u8[512]{0}', space=smem, size = 0x200, scoped, tag = 'prefetched SMEM operand 0']
  #allocation5 [shape = 'u8[512]{0}', space=smem, size = 0x200, scoped, tag = 'prefetched SMEM operand 1']
  #allocation6 [shape = 'u8[512]{0}', space=smem, size = 0x200, scoped, tag = 'prefetched SMEM operand 2']
  #allocation9 [shape = 's32[]', space=sflag, size = 0x4, offset = 0, fixed_abs, tag = 'sflag constant byte address 0x0 - dummy sync flag']
  #allocation10 [shape = 's32[]', space=sflag, size = 0x4, offset = 0, fixed_abs, tag = 'sflag constant byte address 0x0 - dummy sync flag']
  #allocation11 [shape = 'u32[]', space=smem, size = 0x4, offset = 0x44, fixed_abs, tag = 'smem constant byte address 0x44 - assertion arg 0']
  #allocation12 [shape = 'u32[]', space=smem, size = 0x4, offset = 0x48, fixed_abs, tag = 'smem constant byte address 0x48 - assertion arg 1']
  #allocation13 [shape = 's32[]', space=sflag, size = 0x4, offset = 0, fixed_abs, tag = 'sflag constant byte address 0x0 - dummy sync flag']
  #allocation14 [shape = 's32[]', space=sflag, size = 0x4, offset = 0, fixed_abs, tag = 'sflag constant byte address 0x0 - dummy sync flag']
  #allocation15 [shape = 's32[]', space=sflag, size = 0x4, offset = 0, fixed_abs, tag = 'sflag constant byte address 0x0 - dummy sync flag']
  #allocation16 [shape = 's32[]', space=sflag, size = 0x4, offset = 0, fixed_abs, tag = 'sflag constant byte address 0x0 - dummy sync flag']
  #allocation17 [shape = 's32[]', space=sflag, size = 0x4, offset = 0, fixed_abs, tag = 'sflag constant byte address 0x0 - dummy sync flag']
  #allocation18 [shape = 's32[]', space=sflag, size = 0x4, offset = 0, fixed_abs, tag = 'sflag constant byte address 0x0 - dummy sync flag']
  #allocation19 [shape = 's32[]', space=sflag, size = 0x4, offset = 0, fixed_abs, tag = 'sflag constant byte address 0x0 - dummy sync flag']
  #allocation20 [shape = 's32[]', space=sflag, size = 0x4, offset = 0, fixed_abs, tag = 'sflag constant byte address 0x0 - dummy sync flag']
  #allocation21 [shape = 's32[]', space=sflag, size = 0x4, offset = 0, fixed_abs, tag = 'sflag constant byte address 0x0 - dummy sync flag']
  #allocation22 [shape = 's32[]', space=sflag, size = 0x4, offset = 0, fixed_abs, tag = 'sflag constant byte address 0x0 - dummy sync flag']
  #allocation23 [shape = 's32[]', space=sflag, size = 0x4, offset = 0, fixed_abs, tag = 'sflag constant byte address 0x0 - dummy sync flag']
  #allocation24 [shape = 's32[]', space=sflag, size = 0x4, offset = 0, fixed_abs, tag = 'sflag constant byte address 0x0 - dummy sync flag']
  #allocation25 [shape = 's32[]', space=sflag, size = 0x4, offset = 0, fixed_abs, tag = 'sflag constant byte address 0x0 - dummy sync flag']
  #allocation26 [shape = 's32[]', space=sflag, size = 0x4, offset = 0, fixed_abs, tag = 'sflag constant byte address 0x0 - dummy sync flag']
  #allocation27 [shape = 's32[]', space=sflag, size = 0x4, offset = 0, fixed_abs, tag = 'sflag constant byte address 0x0 - dummy sync flag']
  #allocation28 [shape = 's32[]', space=sflag, size = 0x4, offset = 0, fixed_abs, tag = 'sflag constant byte address 0x0 - dummy sync flag']
  #allocation29 [shape = 's32[]', space=sflag, size = 0x4, offset = 0, fixed_abs, tag = 'sflag constant byte address 0x0 - dummy sync flag']
  #allocation30 [shape = 's32[]', space=sflag, size = 0x4, offset = 0, fixed_abs, tag = 'sflag constant byte address 0x0 - dummy sync flag']
  #allocation31 [shape = 's32[]', space=sflag, size = 0x4, offset = 0, fixed_abs, tag = 'sflag constant byte address 0x0 - dummy sync flag']
  #allocation32 [shape = 's32[]', space=sflag, size = 0x4, offset = 0, fixed_abs, tag = 'sflag constant byte address 0x0 - dummy sync flag']
  #allocation33 [shape = 's32[]', space=sflag, size = 0x4, offset = 0, fixed_abs, tag = 'sflag constant byte address 0x0 - dummy sync flag']
  #allocation34 [shape = 's32[]', space=sflag, size = 0x4, offset = 0, fixed_abs, tag = 'sflag constant byte address 0x0 - dummy sync flag']
  %s0 = inlined_call_operand.hbm [shape: s32[4], index: 0, kind: input, shape index: {}]
  %s1 = inlined_call_operand.vmem [shape: s32[4], index: 1, kind: input, shape index: {}]
  %s2 = inlined_call_operand.vmem [shape: s32[4], index: 2, kind: input, shape index: {}]
  %s3 = inlined_call_operand.hbm [shape: f32[9,2,128], index: 3, kind: input, shape index: {}]
  %s4 = inlined_call_operand.hbm [shape: f32[4,3,2,128], index: 4, kind: output, shape index: {}]
  %s5 = sld [smem:[#allocation0]]
  $region58: #{tpu_custom_call.1} parent=0
    _
  %s7 = ssub.s32 1, %s5
  %s8 = scalar_select 0, %s7, %s5
  %10 = dma.hbm_to_smem %s0, 16, [#allocation4], [#allocation3]
  %s11 = sshll.u32 %s1, 4
  %s12 = int_to_ptr.vmem [resolvable:$true] %s11
  %14 = dma.vmem_to_smem %s12, 16, [#allocation5], [#allocation3]
  %s15 = sshll.u32 %s2, 4
  %s16 = int_to_ptr.vmem [resolvable:$true] %s15
  %18 = dma.vmem_to_smem %s16, 16, [#allocation6], [#allocation3]
  %19 = dma.done [#allocation3], 48
  %20 = sfence
  $region1: #{tpu_custom_call.1} parent=0
    #allocation7 [shape = 'u8[12288]{0}', space=vmem, size = 0x3000, scoped, tag = 'output window, operand 0, single buffered']
    #allocation8 [shape = 's32[1]{0}', space=sflag, size = 0x4, scoped, tag = 'scoped memory for tpu_custom_call.1']
    %21 = vsyncpa [#allocation8], 0
    %s22 = smul.u32 0, 4
    %s23 = sld [smem:[#allocation4 + %s22]]
    %s24 = smul.u32 %s23, 2
    %s25 = smul.addr %s24, 16
    %s26 = scalar_lea.hbm %s3, %s25
    // Predicated region
    $region2: #{tpu_custom_call.1} parent=1 // pred_check
      _
    $region3: #{tpu_custom_call.1} parent=1 // pred_check_branch
      %28 = sbr.rel target = $region5
    $region4: #{tpu_custom_call.1} parent=1 // pred_region
      %29 = sst [smem:[#allocation11]] [#allocation10]
      %30 = sst [smem:[#allocation12]] [#allocation9]
    $region5: #{tpu_custom_call.1} parent=1 // pred_fallthru
      _
    %32 = shalt.err (0)
    %s34 = sshll.u32 [#allocation7], 4
    %s35 = int_to_ptr.vmem [resolvable:$true] %s34
    %37 = dma.hbm_to_vmem [thread:$0]  %s26, 32, %s35, [#allocation2]
    %s38 = sld [smem:[#allocation5 + %s22]]
    %s39 = smul.u32 %s38, 2
    %s40 = smul.addr %s39, 16
    %s41 = scalar_lea.hbm %s3, %s40
    %s42 = scalar_lea.vmem [#allocation7], 2
    %s43 = scalar_lea.sflag [#allocation2], 1
    // Predicated region
    $region6: #{tpu_custom_call.1} parent=1 // pred_check
      _
    $region7: #{tpu_custom_call.1} parent=1 // pred_check_branch
      %45 = sbr.rel target = $region9
    $region8: #{tpu_custom_call.1} parent=1 // pred_region
      %46 = sst [smem:[#allocation11]] [#allocation14]
      %47 = sst [smem:[#allocation12]] [#allocation13]
    $region9: #{tpu_custom_call.1} parent=1 // pred_fallthru
      _
    %49 = shalt.err (0)
    %s51 = sshll.u32 %s42, 4
    %s52 = int_to_ptr.vmem [resolvable:$true] %s51
    %54 = dma.hbm_to_vmem [thread:$0]  %s41, 32, %s52, %s43
    %s55 = sld [smem:[#allocation6 + %s22]]
    %s56 = smul.u32 %s55, 2
    %s57 = smul.addr %s56, 16
    %s58 = scalar_lea.hbm %s3, %s57
    %s59 = scalar_lea.vmem [#allocation7], 4
    %s60 = scalar_lea.sflag [#allocation2], 2
    // Predicated region
    $region10: #{tpu_custom_call.1} parent=1 // pred_check
      _
    $region11: #{tpu_custom_call.1} parent=1 // pred_check_branch
      %62 = sbr.rel target = $region13
    $region12: #{tpu_custom_call.1} parent=1 // pred_region
      %63 = sst [smem:[#allocation11]] [#allocation16]
      %64 = sst [smem:[#allocation12]] [#allocation15]
    $region13: #{tpu_custom_call.1} parent=1 // pred_fallthru
      _
    %66 = shalt.err (0)
    %s68 = sshll.u32 %s59, 4
    %s69 = int_to_ptr.vmem [resolvable:$true] %s68
    %71 = dma.hbm_to_vmem [thread:$0]  %s58, 32, %s69, %s60
    %s72 = sadd.s32 %s22, 1
    %s73 = sld [smem:[#allocation4 + %s72]]
    %s74 = smul.u32 %s73, 2
    %s75 = smul.addr %s74, 16
    %s76 = scalar_lea.hbm %s3, %s75
    %s77 = scalar_lea.vmem [#allocation7], 6
    %s78 = scalar_lea.sflag [#allocation2], 3
    // Predicated region
    $region14: #{tpu_custom_call.1} parent=1 // pred_check
      _
    $region15: #{tpu_custom_call.1} parent=1 // pred_check_branch
      %80 = sbr.rel target = $region17
    $region16: #{tpu_custom_call.1} parent=1 // pred_region
      %81 = sst [smem:[#allocation11]] [#allocation18]
      %82 = sst [smem:[#allocation12]] [#allocation17]
    $region17: #{tpu_custom_call.1} parent=1 // pred_fallthru
      _
    %84 = shalt.err (0)
    %s86 = sshll.u32 %s77, 4
    %s87 = int_to_ptr.vmem [resolvable:$true] %s86
    %89 = dma.hbm_to_vmem [thread:$0]  %s76, 32, %s87, %s78
    %s90 = sld [smem:[#allocation5 + %s72]]
    %s91 = smul.u32 %s90, 2
    %s92 = smul.addr %s91, 16
    %s93 = scalar_lea.hbm %s3, %s92
    %s94 = scalar_lea.vmem [#allocation7], 8
    %s95 = scalar_lea.sflag [#allocation2], 4
    // Predicated region
    $region18: #{tpu_custom_call.1} parent=1 // pred_check
      _
    $region19: #{tpu_custom_call.1} parent=1 // pred_check_branch
      %97 = sbr.rel target = $region21
    $region20: #{tpu_custom_call.1} parent=1 // pred_region
      %98 = sst [smem:[#allocation11]] [#allocation20]
      %99 = sst [smem:[#allocation12]] [#allocation19]
    $region21: #{tpu_custom_call.1} parent=1 // pred_fallthru
      _
    %101 = shalt.err (0)
    %s103 = sshll.u32 %s94, 4
    %s104 = int_to_ptr.vmem [resolvable:$true] %s103
    %106 = dma.hbm_to_vmem [thread:$0]  %s93, 32, %s104, %s95
    %s107 = sld [smem:[#allocation6 + %s72]]
    %s108 = smul.u32 %s107, 2
    %s109 = smul.addr %s108, 16
    %s110 = scalar_lea.hbm %s3, %s109
    %s111 = scalar_lea.vmem [#allocation7], 10
    %s112 = scalar_lea.sflag [#allocation2], 5
    // Predicated region
    $region22: #{tpu_custom_call.1} parent=1 // pred_check
      _
    $region23: #{tpu_custom_call.1} parent=1 // pred_check_branch
      %114 = sbr.rel target = $region25
    $region24: #{tpu_custom_call.1} parent=1 // pred_region
      %115 = sst [smem:[#allocation11]] [#allocation22]
      %116 = sst [smem:[#allocation12]] [#allocation21]
    $region25: #{tpu_custom_call.1} parent=1 // pred_fallthru
      _
    %118 = shalt.err (0)
    %s120 = sshll.u32 %s111, 4
    %s121 = int_to_ptr.vmem [resolvable:$true] %s120
    %123 = dma.hbm_to_vmem [thread:$0]  %s110, 32, %s121, %s112
    %s124 = sadd.s32 %s22, 2
    %s125 = sld [smem:[#allocation4 + %s124]]
    %s126 = smul.u32 %s125, 2
    %s127 = smul.addr %s126, 16
    %s128 = scalar_lea.hbm %s3, %s127
    %s129 = scalar_lea.vmem [#allocation7], 12
    %s130 = scalar_lea.sflag [#allocation2], 6
    // Predicated region
    $region26: #{tpu_custom_call.1} parent=1 // pred_check
      _
    $region27: #{tpu_custom_call.1} parent=1 // pred_check_branch
      %132 = sbr.rel target = $region29
    $region28: #{tpu_custom_call.1} parent=1 // pred_region
      %133 = sst [smem:[#allocation11]] [#allocation24]
      %134 = sst [smem:[#allocation12]] [#allocation23]
    $region29: #{tpu_custom_call.1} parent=1 // pred_fallthru
      _
    %136 = shalt.err (0)
    %s138 = sshll.u32 %s129, 4
    %s139 = int_to_ptr.vmem [resolvable:$true] %s138
    %141 = dma.hbm_to_vmem [thread:$0]  %s128, 32, %s139, %s130
    %s142 = sld [smem:[#allocation5 + %s124]]
    %s143 = smul.u32 %s142, 2
    %s144 = smul.addr %s143, 16
    %s145 = scalar_lea.hbm %s3, %s144
    %s146 = scalar_lea.vmem [#allocation7], 14
    %s147 = scalar_lea.sflag [#allocation2], 7
    // Predicated region
    $region30: #{tpu_custom_call.1} parent=1 // pred_check
      _
    $region31: #{tpu_custom_call.1} parent=1 // pred_check_branch
      %149 = sbr.rel target = $region33
    $region32: #{tpu_custom_call.1} parent=1 // pred_region
      %150 = sst [smem:[#allocation11]] [#allocation26]
      %151 = sst [smem:[#allocation12]] [#allocation25]
    $region33: #{tpu_custom_call.1} parent=1 // pred_fallthru
      _
    %153 = shalt.err (0)
    %s155 = sshll.u32 %s146, 4
    %s156 = int_to_ptr.vmem [resolvable:$true] %s155
    %158 = dma.hbm_to_vmem [thread:$0]  %s145, 32, %s156, %s147
    %s159 = sld [smem:[#allocation6 + %s124]]
    %s160 = smul.u32 %s159, 2
    %s161 = smul.addr %s160, 16
    %s162 = scalar_lea.hbm %s3, %s161
    %s163 = scalar_lea.vmem [#allocation7], 16
    %s164 = scalar_lea.sflag [#allocation2], 8
    // Predicated region
    $region34: #{tpu_custom_call.1} parent=1 // pred_check
      _
    $region35: #{tpu_custom_call.1} parent=1 // pred_check_branch
      %166 = sbr.rel target = $region37
    $region36: #{tpu_custom_call.1} parent=1 // pred_region
      %167 = sst [smem:[#allocation11]] [#allocation28]
      %168 = sst [smem:[#allocation12]] [#allocation27]
    $region37: #{tpu_custom_call.1} parent=1 // pred_fallthru
      _
    %170 = shalt.err (0)
    %s172 = sshll.u32 %s163, 4
    %s173 = int_to_ptr.vmem [resolvable:$true] %s172
    %175 = dma.hbm_to_vmem [thread:$0]  %s162, 32, %s173, %s164
    %s176 = sadd.s32 %s22, 3
    %s177 = sld [smem:[#allocation4 + %s176]]
    %s178 = smul.u32 %s177, 2
    %s179 = smul.addr %s178, 16
    %s180 = scalar_lea.hbm %s3, %s179
    %s181 = scalar_lea.vmem [#allocation7], 18
    %s182 = scalar_lea.sflag [#allocation2], 9
    // Predicated region
    $region38: #{tpu_custom_call.1} parent=1 // pred_check
      _
    $region39: #{tpu_custom_call.1} parent=1 // pred_check_branch
      %184 = sbr.rel target = $region41
    $region40: #{tpu_custom_call.1} parent=1 // pred_region
      %185 = sst [smem:[#allocation11]] [#allocation30]
      %186 = sst [smem:[#allocation12]] [#allocation29]
    $region41: #{tpu_custom_call.1} parent=1 // pred_fallthru
      _
    %188 = shalt.err (0)
    %s190 = sshll.u32 %s181, 4
    %s191 = int_to_ptr.vmem [resolvable:$true] %s190
    %193 = dma.hbm_to_vmem [thread:$0]  %s180, 32, %s191, %s182
    %s194 = sld [smem:[#allocation5 + %s176]]
    %s195 = smul.u32 %s194, 2
    %s196 = smul.addr %s195, 16
    %s197 = scalar_lea.hbm %s3, %s196
    %s198 = scalar_lea.vmem [#allocation7], 20
    %s199 = scalar_lea.sflag [#allocation2], 10
    // Predicated region
    $region42: #{tpu_custom_call.1} parent=1 // pred_check
      _
    $region43: #{tpu_custom_call.1} parent=1 // pred_check_branch
      %201 = sbr.rel target = $region45
    $region44: #{tpu_custom_call.1} parent=1 // pred_region
      %202 = sst [smem:[#allocation11]] [#allocation32]
      %203 = sst [smem:[#allocation12]] [#allocation31]
    $region45: #{tpu_custom_call.1} parent=1 // pred_fallthru
      _
    %205 = shalt.err (0)
    %s207 = sshll.u32 %s198, 4
    %s208 = int_to_ptr.vmem [resolvable:$true] %s207
    %210 = dma.hbm_to_vmem [thread:$0]  %s197, 32, %s208, %s199
    %s211 = sld [smem:[#allocation6 + %s176]]
    %s212 = smul.u32 %s211, 2
    %s213 = smul.addr %s212, 16
    %s214 = scalar_lea.hbm %s3, %s213
    %s215 = scalar_lea.vmem [#allocation7], 22
    %s216 = scalar_lea.sflag [#allocation2], 11
    // Predicated region
    $region46: #{tpu_custom_call.1} parent=1 // pred_check
      _
    $region47: #{tpu_custom_call.1} parent=1 // pred_check_branch
      %218 = sbr.rel target = $region49
    $region48: #{tpu_custom_call.1} parent=1 // pred_region
      %219 = sst [smem:[#allocation11]] [#allocation34]
      %220 = sst [smem:[#allocation12]] [#allocation33]
    $region49: #{tpu_custom_call.1} parent=1 // pred_fallthru
      _
    %222 = shalt.err (0)
    %s224 = sshll.u32 %s215, 4
    %s225 = int_to_ptr.vmem [resolvable:$true] %s224
    %227 = dma.hbm_to_vmem [thread:$0]  %s214, 32, %s225, %s216
    %s228 = smul.u32 2, 1
    %s229 = sshll.u32 %s228, 4
    %230 = dma.done [#allocation2], %s229
    %s231 = sshll.u32 %s228, 4
    %232 = dma.done %s43, %s231
    %s233 = sshll.u32 %s228, 4
    %234 = dma.done %s60, %s233
    %s235 = sshll.u32 %s228, 4
    %236 = dma.done %s78, %s235
    %s237 = sshll.u32 %s228, 4
    %238 = dma.done %s95, %s237
    %s239 = sshll.u32 %s228, 4
    %240 = dma.done %s112, %s239
    %s241 = sshll.u32 %s228, 4
    %242 = dma.done %s130, %s241
    %s243 = sshll.u32 %s228, 4
    %244 = dma.done %s147, %s243
    %s245 = sshll.u32 %s228, 4
    %246 = dma.done %s164, %s245
    %s247 = sshll.u32 %s228, 4
    %248 = dma.done %s182, %s247
    %s249 = sshll.u32 %s228, 4
    %250 = dma.done %s199, %s249
    %s251 = sshll.u32 %s228, 4
    %252 = dma.done %s216, %s251
    // Predicated region
    $region50: #{tpu_custom_call.1} parent=1 // pred_check
      _
    $region51: #{tpu_custom_call.1} parent=1 // pred_check_branch
      %254 = sbr.rel (0) target = $region53
    $region52: #{tpu_custom_call.1} parent=1 // pred_region
      %s256 = ssub.s32 384, 384
      %257 = vsyncadd [#allocation8], %s256
      %s258 = sshll.u32 [#allocation7], 4
      %s259 = int_to_ptr.vmem [resolvable:$true] %s258
      %264 = dma.vmem_to_hbm [thread:$0]  %s259, 384, %s4, [#allocation8], 32, 32, 2
    $region53: #{tpu_custom_call.1} parent=1 // pred_fallthru
      _
    // Predicated region
    $region54: #{tpu_custom_call.1} parent=1 // pred_check
      _
    $region55: #{tpu_custom_call.1} parent=1 // pred_check_branch
      %266 = sbr.rel (0) target = $region57
    $region56: #{tpu_custom_call.1} parent=1 // pred_region
      %267 = dma.done [#allocation8], 384
    $region57: #{tpu_custom_call.1} parent=1 // pred_fallthru
      _
    %268 = vsyncpa [#allocation8], 1
  %269 = vsyncmov [#allocation2]
  %s270 = vpop.sfrf %269
  %p271 = scmp.eq.s32.totalorder %s270, 0
  %p272 = pneg %p271
  %274 = shalt.err (%p272)
  %s275 = scalar_lea.sflag [#allocation2], 1
  %276 = vsyncmov %s275
  %s277 = vpop.sfrf %276
  %p278 = scmp.eq.s32.totalorder %s277, 0
  %p279 = pneg %p278
  %281 = shalt.err (%p279)
  %s282 = scalar_lea.sflag [#allocation2], 2
  %283 = vsyncmov %s282
  %s284 = vpop.sfrf %283
  %p285 = scmp.eq.s32.totalorder %s284, 0
  %p286 = pneg %p285
  %288 = shalt.err (%p286)
  %s289 = scalar_lea.sflag [#allocation2], 3
  %290 = vsyncmov %s289
  %s291 = vpop.sfrf %290
  %p292 = scmp.eq.s32.totalorder %s291, 0
  %p293 = pneg %p292
  %295 = shalt.err (%p293)
  %s296 = scalar_lea.sflag [#allocation2], 4
  %297 = vsyncmov %s296
  %s298 = vpop.sfrf %297
  %p299 = scmp.eq.s32.totalorder %s298, 0
  %p300 = pneg %p299
  %302 = shalt.err (%p300)
  %s303 = scalar_lea.sflag [#allocation2], 5
  %304 = vsyncmov %s303
  %s305 = vpop.sfrf %304
  %p306 = scmp.eq.s32.totalorder %s305, 0
  %p307 = pneg %p306
  %309 = shalt.err (%p307)
  %s310 = scalar_lea.sflag [#allocation2], 6
  %311 = vsyncmov %s310
  %s312 = vpop.sfrf %311
  %p313 = scmp.eq.s32.totalorder %s312, 0
  %p314 = pneg %p313
  %316 = shalt.err (%p314)
  %s317 = scalar_lea.sflag [#allocation2], 7
  %318 = vsyncmov %s317
  %s319 = vpop.sfrf %318
  %p320 = scmp.eq.s32.totalorder %s319, 0
  %p321 = pneg %p320
  %323 = shalt.err (%p321)
  %s324 = scalar_lea.sflag [#allocation2], 8
  %325 = vsyncmov %s324
  %s326 = vpop.sfrf %325
  %p327 = scmp.eq.s32.totalorder %s326, 0
  %p328 = pneg %p327
  %330 = shalt.err (%p328)
  %s331 = scalar_lea.sflag [#allocation2], 9
  %332 = vsyncmov %s331
  %s333 = vpop.sfrf %332
  %p334 = scmp.eq.s32.totalorder %s333, 0
  %p335 = pneg %p334
  %337 = shalt.err (%p335)
  %s338 = scalar_lea.sflag [#allocation2], 10
  %339 = vsyncmov %s338
  %s340 = vpop.sfrf %339
  %p341 = scmp.eq.s32.totalorder %s340, 0
  %p342 = pneg %p341
  %344 = shalt.err (%p342)
  %s345 = scalar_lea.sflag [#allocation2], 11
  %346 = vsyncmov %s345
  %s347 = vpop.sfrf %346
  %p348 = scmp.eq.s32.totalorder %s347, 0
  %p349 = pneg %p348
  %351 = shalt.err (%p349)

</llo_original>
